<compile_context>
chip_gen: v6e
topology: v6e:2x2x1
jax: 0.10.0
libtpu: 0.0.40
codegen_flags: <defaults>
</compile_context>

<pallas_src>
import math

import jax
import jax.numpy as jnp
from jax.experimental import pallas as pl
from jax.experimental.pallas import tpu as pltpu


def _round_up(v, m):
    return ((v + m - 1) // m) * m


def _arc_kernel(z_ref, invz_ref, w_ref, wrn_ref, o_ref):
    """One (i, j, k) grid step.

    z_ref:    [tm, tk]  (x - eq) tile, matmul dtype
    invz_ref: [tm, 1]   precomputed 1/||x - eq|| per row, f32
    w_ref:    [tn, tk]  class-weight tile, matmul dtype (nn.Linear layout)
    wrn_ref:  [1, tn]   precomputed 1/||w_o|| per class, f32
    o_ref:    [tm, tn]  f32 output block; resident across the k axis (accumulator)
    """
    k = pl.program_id(2)

    # MXU matmul: contract last dims of z [tm, tk] and W [tn, tk] -> [tm, tn].
    # No transposed weight copy (no XLU transpose); f32 accumulation on the MXU.
    partial = jax.lax.dot_general(
        z_ref[...],
        w_ref[...],
        dimension_numbers=(((1,), (1,)), ((), ())),
        preferred_element_type=jnp.float32,
    )

    @pl.when(k == 0)
    def _init():
        o_ref[...] = partial

    @pl.when(k > 0)
    def _accumulate():
        o_ref[...] += partial

    @pl.when(k == pl.num_programs(2) - 1)
    def _finalize():
        # Row-scale by 1/||z|| and column-scale by 1/||w_o|| (both precomputed, f32).
        o_ref[...] = o_ref[...] * invz_ref[...] * wrn_ref[...]


def _dimension_semantics(grid_j):
    """CORE_PARALLEL on the class axis for v7x's 2 TensorCores, else the validated
    ("parallel","parallel","arbitrary")."""
    try:
        kind = jax.devices()[0].device_kind.lower()
    except Exception:  # pragma: no cover - defensive
        kind = ""
    is_v7 = ("v7" in kind) or ("tpu7" in kind)
    if is_v7 and grid_j % 2 == 0:
        # Split the W stream (dominant HBM traffic for large O) across the two TCs.
        return (pltpu.PARALLEL, pltpu.CORE_PARALLEL, pltpu.ARBITRARY)
    return ("parallel", "parallel", "arbitrary")


def make_arc_classifier(weight, *, matmul_dtype=jnp.bfloat16, tm_max=None,
                        tn_max=512, tk_max=1024,
                        vmem_budget_bytes=24 * 1024 * 1024,
                        vmem_limit_bytes=48 * 1024 * 1024):
    """Prepare static (weight-side) state once and return a jitted forward(x, eq).

    weight: [O, D] class weights (PyTorch nn.Linear layout)
    forward(x, eq): x, eq [B, D] -> [B, O] cosine logits (float32)

    Matches torch.div semantics exactly: a genuinely zero row in (x - eq) or in the
    weight yields Inf/NaN (no epsilon).
    """
    O, D = weight.shape
    mm_bytes = jnp.dtype(matmul_dtype).itemsize

    # Class / feature tile sizes (multiples of 128 in the lane dim; lane-dense output).
    tn = min(tn_max, _round_up(O, 128))
    tk = min(tk_max, _round_up(D, 128))
    Op = _round_up(O, tn)
    Dp = _round_up(D, tk)

    # ---- hoisted, done once: weight pad + cast + reciprocal row norms -------------
    w32 = weight.astype(jnp.float32)
    w_rnorm = jax.lax.rsqrt(jnp.sum(w32 * w32, axis=1))[None, :]          # [1, O] f32
    if (Op, Dp) != (O, D):
        w_p = jnp.pad(w32, ((0, Op - O), (0, Dp - D)))
    else:
        w_p = w32
    w_p = w_p.astype(matmul_dtype)
    if Op != O:
        # pad with 1.0 so padded class columns stay finite (they are sliced off anyway)
        wrn_p = jnp.pad(w_rnorm, ((0, 0), (0, Op - O)), constant_values=1.0)
    else:
        wrn_p = w_rnorm

    def _pick_tm(batch):
        """Largest batch tile (multiple of 8) fitting the double-buffered VMEM budget;
        prefer the whole (padded) batch resident so W is streamed exactly once."""
        bp8 = _round_up(batch, 8)
        fixed = 2 * tn * tk * mm_bytes + 2 * tn * 4                # W tiles + wrn
        per_row = 2 * tk * mm_bytes + 2 * tn * 4 + 2 * 4           # z + out + invz
        budget_rows = (vmem_budget_bytes - fixed) // per_row
        tm = max(8, (int(budget_rows) // 8) * 8)
        tm = min(tm, bp8)
        if tm_max is not None:
            tm = min(tm, max(8, (tm_max // 8) * 8))
        return tm

    @jax.jit
    def forward(x, eq):
        B, Dx = x.shape
        assert Dx == D, (Dx, D)

        # dropout(p=0.5) is identity in eval mode.
        z = x.astype(jnp.float32) - eq.astype(jnp.float32)                 # [B, D] f32
        inv_z = jax.lax.rsqrt(jnp.sum(z * z, axis=1, keepdims=True))       # [B, 1] f32

        tm = _pick_tm(B)
        Bp = _round_up(B, tm)

        if (Bp, Dp) != (B, D):
            z_p = jnp.pad(z, ((0, Bp - B), (0, Dp - D)))
        else:
            z_p = z
        z_p = z_p.astype(matmul_dtype)
        if Bp != B:
            # pad with 1.0 so padded rows stay finite (sliced off below)
            invz_p = jnp.pad(inv_z, ((0, Bp - B), (0, 0)), constant_values=1.0)
        else:
            invz_p = inv_z

        grid = (Bp // tm, Op // tn, Dp // tk)

        cost = pl.CostEstimate(
            flops=2 * Bp * Op * Dp,
            transcendentals=0,
            bytes_accessed=int(z_p.size * mm_bytes + w_p.size * mm_bytes
                               + invz_p.size * 4 + wrn_p.size * 4 + Bp * Op * 4),
        )

        out_p = pl.pallas_call(
            _arc_kernel,
            out_shape=jax.ShapeDtypeStruct((Bp, Op), jnp.float32),
            grid_spec=pltpu.PrefetchScalarGridSpec(
                num_scalar_prefetch=0,
                grid=grid,
                in_specs=[
                    pl.BlockSpec((tm, tk), lambda i, j, k: (i, k)),   # z tile
                    pl.BlockSpec((tm, 1), lambda i, j, k: (i, 0)),    # 1/||z|| rows
                    pl.BlockSpec((tn, tk), lambda i, j, k: (j, k)),   # W tile
                    pl.BlockSpec((1, tn), lambda i, j, k: (0, j)),    # 1/||w|| cols
                ],
                out_specs=pl.BlockSpec((tm, tn), lambda i, j, k: (i, j)),
            ),
            compiler_params=pltpu.CompilerParams(
                dimension_semantics=_dimension_semantics(grid[1]),
                vmem_limit_bytes=vmem_limit_bytes,
            ),
            cost_estimate=cost,
        )(z_p, invz_p, w_p, wrn_p)

        return out_p[:B, :O]

    return forward


def arc_classifier_forward(x, eq, weight, **kwargs):
    """One-shot convenience wrapper (weight prep not amortized)."""
    return make_arc_classifier(weight, **kwargs)(x, eq)


def _reference(x, eq, weight):
    z = x - eq
    zn = z / jnp.linalg.norm(z, axis=1, keepdims=True)
    wn = weight / jnp.linalg.norm(weight, axis=1, keepdims=True)
    return zn @ wn.T


if __name__ == "__main__":
    # Small shapes consistent with the module's forward signature.
    B, in_features, out_features = 8, 32, 16

    key = jax.random.PRNGKey(0)
    kx, keq, kw = jax.random.split(key, 3)

    x = jax.random.normal(kx, (B, in_features), dtype=jnp.float32)
    eq = jax.random.normal(keq, (B, in_features), dtype=jnp.float32)

    # Deterministic parameter init matching ArcMarginProduct.reset_parameters():
    # uniform(-stdv, stdv) with stdv = 1/sqrt(in_features).
    stdv = 1.0 / math.sqrt(in_features)
    weight = jax.random.uniform(
        kw, (out_features, in_features), dtype=jnp.float32,
        minval=-stdv, maxval=stdv,
    )

    ref = _reference(x, eq, weight)

    # bf16-matmul path (default; MXU throughput / half the W HBM traffic).
    fwd_bf16 = make_arc_classifier(weight)
    out_bf16 = jax.block_until_ready(fwd_bf16(x, eq))
    assert out_bf16.shape == (B, out_features)
    assert jnp.allclose(out_bf16, ref, atol=1e-2, rtol=1e-2), \
        float(jnp.max(jnp.abs(out_bf16 - ref)))

    # f32-matmul path (tight tolerance vs reference).
    fwd_f32 = make_arc_classifier(weight, matmul_dtype=jnp.float32)
    out_f32 = jax.block_until_ready(fwd_f32(x, eq))
    assert jnp.allclose(out_f32, ref, atol=1e-5, rtol=1e-5), \
        float(jnp.max(jnp.abs(out_f32 - ref)))

    # Second small shape exercising padding in every dim plus a multi-tile grid
    # (i, j, k all > 1) via small tile caps.
    B2, D2, O2 = 20, 200, 300
    k1, k2, k3 = jax.random.split(jax.random.PRNGKey(1), 3)
    x2 = jax.random.normal(k1, (B2, D2), dtype=jnp.float32)
    eq2 = jax.random.normal(k2, (B2, D2), dtype=jnp.float32)
    w2 = jax.random.uniform(k3, (O2, D2), dtype=jnp.float32,
                            minval=-1.0 / math.sqrt(D2), maxval=1.0 / math.sqrt(D2))
    fwd2 = make_arc_classifier(w2, matmul_dtype=jnp.float32,
                               tm_max=8, tn_max=128, tk_max=128)
    out2 = jax.block_until_ready(fwd2(x2, eq2))
    assert out2.shape == (B2, O2)
    assert jnp.allclose(out2, _reference(x2, eq2, w2), atol=1e-5, rtol=1e-5), \
        float(jnp.max(jnp.abs(out2 - _reference(x2, eq2, w2))))

    print("KERNEL_OK")
</pallas_src>

<mosaic_0001>
module attributes {stable_mosaic.version = 11 : i64} {
  func.func @_arc_kernel(%arg0: i32, %arg1: i32, %arg2: i32, %arg3: memref<8x128xbf16, #tpu.memory_space<vmem>>, %arg4: memref<8x1xf32, #tpu.memory_space<vmem>>, %arg5: memref<128x128xbf16, #tpu.memory_space<vmem>>, %arg6: memref<1x128xf32, #tpu.memory_space<vmem>>, %arg7: memref<8x128xf32, #tpu.memory_space<vmem>>) attributes {dimension_semantics = [#tpu.dimension_semantics<parallel>, #tpu.dimension_semantics<parallel>, #tpu.dimension_semantics<arbitrary>], iteration_bounds = array<i64: 1, 1, 1>, scalar_prefetch = 0 : i64, scratch_operands = 0 : i64, tpu.core_type = #tpu.core_type<tc>, window_params = [{transform_indices = @transform_0, window_bounds = array<i64: 8, 128>}, {transform_indices = @transform_1, window_bounds = array<i64: 8, 1>}, {transform_indices = @transform_2, window_bounds = array<i64: 128, 128>}, {transform_indices = @transform_3, window_bounds = array<i64: 1, 128>}, {transform_indices = @transform_4, window_bounds = array<i64: 8, 128>}]} {
    %c0 = arith.constant 0 : index
    %c0_0 = arith.constant 0 : index
    %0 = vector.load %arg3[%c0, %c0_0] : memref<8x128xbf16, #tpu.memory_space<vmem>>, vector<8x128xbf16>
    %c0_1 = arith.constant 0 : index
    %c0_2 = arith.constant 0 : index
    %1 = vector.load %arg5[%c0_1, %c0_2] : memref<128x128xbf16, #tpu.memory_space<vmem>>, vector<128x128xbf16>
    %cst = arith.constant dense<0.000000e+00> : vector<8x128xf32>
    %2 = tpu.matmul %0, %1, %cst {dimension_numbers = #tpu.dot_dimension_numbers<[1], [1], [0], [0], [0, 0, 1, 0], [], []>} : vector<8x128xbf16>, vector<128x128xbf16>, vector<8x128xf32> -> vector<8x128xf32>
    %c0_i32 = arith.constant 0 : i32
    %3 = arith.cmpi eq, %arg2, %c0_i32 : i32
    %4 = arith.extui %3 : i1 to i32
    %c0_i32_3 = arith.constant 0 : i32
    %5 = arith.cmpi ne, %4, %c0_i32_3 : i32
    scf.if %5 {
      %c0_8 = arith.constant 0 : index
      %c0_9 = arith.constant 0 : index
      %12 = vector.load %arg7[%c0_8, %c0_9] : memref<8x128xf32, #tpu.memory_space<vmem>>, vector<8x128xf32>
      tpu.vector_store %arg7[%c0_8, %c0_9], %2 {strides = array<i32>} : memref<8x128xf32, #tpu.memory_space<vmem>>, vector<8x128xf32>,
    } else {
    }
    %c0_i32_4 = arith.constant 0 : i32
    %6 = arith.cmpi sgt, %arg2, %c0_i32_4 : i32
    %7 = arith.extui %6 : i1 to i32
    %c0_i32_5 = arith.constant 0 : i32
    %8 = arith.cmpi ne, %7, %c0_i32_5 : i32
    scf.if %8 {
      %c0_8 = arith.constant 0 : index
      %c0_9 = arith.constant 0 : index
      %12 = vector.load %arg7[%c0_8, %c0_9] : memref<8x128xf32, #tpu.memory_space<vmem>>, vector<8x128xf32>
      %13 = arith.addf %12, %2 : vector<8x128xf32>
      %c0_10 = arith.constant 0 : index
      %c0_11 = arith.constant 0 : index
      %14 = vector.load %arg7[%c0_10, %c0_11] : memref<8x128xf32, #tpu.memory_space<vmem>>, vector<8x128xf32>
      tpu.vector_store %arg7[%c0_10, %c0_11], %13 {strides = array<i32>} : memref<8x128xf32, #tpu.memory_space<vmem>>, vector<8x128xf32>,
    } else {
    }
    %c0_i32_6 = arith.constant 0 : i32
    %9 = arith.cmpi eq, %arg2, %c0_i32_6 : i32
    %10 = arith.extui %9 : i1 to i32
    %c0_i32_7 = arith.constant 0 : i32
    %11 = arith.cmpi ne, %10, %c0_i32_7 : i32
    scf.if %11 {
      %c0_8 = arith.constant 0 : index
      %c0_9 = arith.constant 0 : index
      %12 = vector.load %arg7[%c0_8, %c0_9] : memref<8x128xf32, #tpu.memory_space<vmem>>, vector<8x128xf32>
      %c0_10 = arith.constant 0 : index
      %c0_11 = arith.constant 0 : index
      %13 = vector.load %arg4[%c0_10, %c0_11] : memref<8x1xf32, #tpu.memory_space<vmem>>, vector<8x1xf32>
      %14 = vector.broadcast %13 : vector<8x1xf32> to vector<8x128xf32>
      %15 = arith.mulf %12, %14 : vector<8x128xf32>
      %c0_12 = arith.constant 0 : index
      %c0_13 = arith.constant 0 : index
      %16 = vector.load %arg6[%c0_12, %c0_13] : memref<1x128xf32, #tpu.memory_space<vmem>>, vector<1x128xf32>
      %17 = vector.broadcast %16 : vector<1x128xf32> to vector<8x128xf32>
      %18 = arith.mulf %15, %17 : vector<8x128xf32>
      %c0_14 = arith.constant 0 : index
      %c0_15 = arith.constant 0 : index
      %19 = vector.load %arg7[%c0_14, %c0_15] : memref<8x128xf32, #tpu.memory_space<vmem>>, vector<8x128xf32>
      tpu.vector_store %arg7[%c0_14, %c0_15], %18 {strides = array<i32>} : memref<8x128xf32, #tpu.memory_space<vmem>>, vector<8x128xf32>,
    } else {
    }
    return
  }
  func.func @transform_0(%arg0: i32, %arg1: i32, %arg2: i32) -> (i32, i32) {
    %c0_i32 = arith.constant 0 : i32
    return %arg0, %arg2 : i32, i32
  }
  func.func @transform_1(%arg0: i32, %arg1: i32, %arg2: i32) -> (i32, i32) {
    %c0_i32 = arith.constant 0 : i32
    %c0_i32_0 = arith.constant 0 : i32
    return %arg0, %c0_i32 : i32, i32
  }
  func.func @transform_2(%arg0: i32, %arg1: i32, %arg2: i32) -> (i32, i32) {
    %c0_i32 = arith.constant 0 : i32
    return %arg1, %arg2 : i32, i32
  }
  func.func @transform_3(%arg0: i32, %arg1: i32, %arg2: i32) -> (i32, i32) {
    %c0_i32 = arith.constant 0 : i32
    %c0_i32_0 = arith.constant 0 : i32
    return %c0_i32, %arg1 : i32, i32
  }
  func.func @transform_4(%arg0: i32, %arg1: i32, %arg2: i32) -> (i32, i32) {
    %c0_i32 = arith.constant 0 : i32
    return %arg0, %arg1 : i32, i32
  }
}

</mosaic_0001>

<llo_original>
// kernel: forward.1
$region0: #{forward.1}
  #allocation0 [shape = 'u32[]', space=smem, size = 0x4, offset = 0x4, fixed_abs, tag = 'smem constant byte address 0x4 - core index']
  #allocation1 [shape = 'u32[144,128]{1,0:T(1,128)}', space=vmem, size = 0x12000, scoped, tag = 'internal scratch']
  %s0 = inlined_call_operand.vmem [shape: bf16[8,128], index: 0, kind: input, shape index: {}]
  %s1 = inlined_call_operand.vmem [shape: f32[8,1], index: 1, kind: input, shape index: {}]
  %s2 = inlined_call_operand.hbm [shape: bf16[128,128], index: 2, kind: input, shape index: {}]
  %s3 = inlined_call_operand.vmem [shape: f32[1,128], index: 3, kind: input, shape index: {}]
  %s4 = inlined_call_operand.hbm [shape: f32[8,128], index: 4, kind: output, shape index: {}]
  %s5 = sld [smem:[#allocation0]]
  $region42: #{forward.1} parent=0
    _
  %s7 = ssub.s32 1, %s5
  %s8 = scalar_select 0, %s7, %s5
  $region1: #{forward.1} parent=0
    #allocation2 [shape = 'u8[32768]{0}', space=vmem, size = 0x8000, scoped, tag = 'input window, operand 2, single buffered']
    #allocation3 [shape = 's32[1]{0}', space=sflag, size = 0x4, scoped, tag = 'scoped memory for forward.1']
    #allocation4 [shape = 's32[1]{0}', space=sflag, size = 0x4, scoped, tag = 'scoped memory for forward.1']
    #allocation5 [shape = 'u8[4096]{0}', space=vmem, size = 0x1000, scoped, tag = 'output window, operand 0, single buffered']
    %9 = vsyncpa [#allocation3], 0
    %10 = vsyncpa [#allocation4], 0
    // Predicated region
    $region2: #{forward.1} parent=1 // pred_check
      _
    $region3: #{forward.1} parent=1 // pred_check_branch
      %12 = sbr.rel (0) target = $region5
    $region4: #{forward.1} parent=1 // pred_region
      _
    $region5: #{forward.1} parent=1 // pred_fallthru
      _
    // Predicated region
    $region6: #{forward.1} parent=1 // pred_check
      _
    $region7: #{forward.1} parent=1 // pred_check_branch
      %14 = sbr.rel (0) target = $region9
    $region8: #{forward.1} parent=1 // pred_region
      _
    $region9: #{forward.1} parent=1 // pred_fallthru
      _
    // Predicated region
    $region10: #{forward.1} parent=1 // pred_check
      _
    $region11: #{forward.1} parent=1 // pred_check_branch
      %16 = sbr.rel (0) target = $region13
    $region12: #{forward.1} parent=1 // pred_region
      %s18 = ssub.s32 1024, 1024
      %19 = vsyncadd [#allocation3], %s18
      %s20 = sshll.u32 [#allocation2], 4
      %s21 = int_to_ptr.vmem [resolvable:$true] %s20
      %26 = dma.hbm_to_vmem [thread:$0]  %s2, 1024, %s21, [#allocation3], 64, 64, 4
    $region13: #{forward.1} parent=1 // pred_fallthru
      _
    // Predicated region
    $region14: #{forward.1} parent=1 // pred_check
      _
    $region15: #{forward.1} parent=1 // pred_check_branch
      %28 = sbr.rel (0) target = $region17
    $region16: #{forward.1} parent=1 // pred_region
      _
    $region17: #{forward.1} parent=1 // pred_fallthru
      _
    // Predicated region
    $region18: #{forward.1} parent=1 // pred_check
      _
    $region19: #{forward.1} parent=1 // pred_check_branch
      %30 = sbr.rel (0) target = $region21
    $region20: #{forward.1} parent=1 // pred_region
      %31 = dma.done [#allocation3], 1024
    $region21: #{forward.1} parent=1 // pred_fallthru
      _
    %v33 = vld [vmem:[%s0] sm:$0xf]
    %v34 = vld [vmem:[#allocation2] sm:$0xf]
    %v35 = vld [vmem:[#allocation2 + $0x4] sm:$0xf]
    %v36 = vld [vmem:[#allocation2 + $0x8] sm:$0xf]
    %v37 = vld [vmem:[#allocation2 + $0xc] sm:$0xf]
    %v38 = vld [vmem:[#allocation2 + $0x10] sm:$0xf]
    %v39 = vld [vmem:[#allocation2 + $0x14] sm:$0xf]
    %v40 = vld [vmem:[#allocation2 + $0x18] sm:$0xf]
    %v41 = vld [vmem:[#allocation2 + $0x1c] sm:$0xf]
    %v42 = vld [vmem:[#allocation2 + $0x20] sm:$0xf]
    %v43 = vld [vmem:[#allocation2 + $0x24] sm:$0xf]
    %v44 = vld [vmem:[#allocation2 + $0x28] sm:$0xf]
    %v45 = vld [vmem:[#allocation2 + $0x2c] sm:$0xf]
    %v46 = vld [vmem:[#allocation2 + $0x30] sm:$0xf]
    %v47 = vld [vmem:[#allocation2 + $0x34] sm:$0xf]
    %v48 = vld [vmem:[#allocation2 + $0x38] sm:$0xf]
    %v49 = vld [vmem:[#allocation2 + $0x3c] sm:$0xf]
    %v66 = vunpack.c.l.b16 %v34
    %v67 = vunpack.c.l.b16 %v35
    %v68 = vunpack.c.l.b16 %v36
    %v69 = vunpack.c.l.b16 %v37
    %v70 = vunpack.c.l.b16 %v38
    %v71 = vunpack.c.l.b16 %v39
    %v72 = vunpack.c.l.b16 %v40
    %v73 = vunpack.c.l.b16 %v41
    %v74 = vunpack.c.l.b16 %v42
    %v75 = vunpack.c.l.b16 %v43
    %v76 = vunpack.c.l.b16 %v44
    %v77 = vunpack.c.l.b16 %v45
    %v78 = vunpack.c.l.b16 %v46
    %v79 = vunpack.c.l.b16 %v47
    %v80 = vunpack.c.l.b16 %v48
    %v81 = vunpack.c.l.b16 %v49
    %v82 = vpack.c.b16 %v67, %v66
    %v83 = vpack.c.b16 %v69, %v68
    %v84 = vpack.c.b16 %v71, %v70
    %v85 = vpack.c.b16 %v73, %v72
    %v86 = vpack.c.b16 %v75, %v74
    %v87 = vpack.c.b16 %v77, %v76
    %v88 = vpack.c.b16 %v79, %v78
    %v89 = vpack.c.b16 %v81, %v80
    %98 = vmatprep.subr.bf16.mxu0 0
    %99 = vmatpush1.bf16.xpose.msra.mxu0 %v89
    %100 = vmatprep.subr.bf16.mxu0 0
    %101 = vmatpush1.bf16.xpose.msra.mxu0 %v88
    %102 = vmatprep.subr.bf16.mxu0 0
    %103 = vmatpush1.bf16.xpose.msra.mxu0 %v87
    %104 = vmatprep.subr.bf16.mxu0 0
    %105 = vmatpush1.bf16.xpose.msra.mxu0 %v86
    %106 = vmatprep.subr.bf16.mxu0 0
    %107 = vmatpush1.bf16.xpose.msra.mxu0 %v85
    %108 = vmatprep.subr.bf16.mxu0 0
    %109 = vmatpush1.bf16.xpose.msra.mxu0 %v84
    %110 = vmatprep.subr.bf16.mxu0 0
    %111 = vmatpush1.bf16.xpose.msra.mxu0 %v83
    %112 = vmatprep.subr.bf16.mxu0 0
    %113 = vmatpush1.bf16.xpose.msra.mxu0 %v82
    %114 = vmatprep.subr.bf16.mxu0 0
    %115 = vmatpush2.bf16.xpose.msra.mxu0 0
    %116 = vmatprep.subr.bf16.mxu0 0
    %117 = vmatpush2.bf16.xpose.msra.mxu0 0
    %118 = vmatprep.subr.bf16.mxu0 0
    %119 = vmatpush2.bf16.xpose.msra.mxu0 0
    %120 = vmatprep.subr.bf16.mxu0 0
    %121 = vmatpush2.bf16.xpose.msra.mxu0 0
    %122 = vmatprep.subr.bf16.mxu0 0
    %123 = vmatpush2.bf16.xpose.msra.mxu0 0
    %124 = vmatprep.subr.bf16.mxu0 0
    %125 = vmatpush2.bf16.xpose.msra.mxu0 0
    %126 = vmatprep.subr.bf16.mxu0 0
    %127 = vmatpush2.bf16.xpose.msra.mxu0 0
    %128 = vmatprep.subr.bf16.mxu0 0
    %129 = vmatpush2.bf16.xpose.msra.mxu0 0
    %130 = vmatprep.mubr.bf16.mxu0 0
    %131 = vmatmul.mubr.bf16.gmra.mxu0 %v33
    %v132 = vpop.f32.mrf.mxu0
    %v133 = vadd.f32 0.0, %v132
    %v134 = vpop.f32.mrf.mxu0
    %v135 = vpop.f32.mrf.mxu0
    %v136 = vpop.f32.mrf.mxu0
    %137 = vdwg.mxu0
    %p138 = scmp.eq.s32.totalorder 0, 0
    // Predicated region
    $region22: #{forward.1} parent=1 // pred_check
      %p139 = pneg %p138
    $region23: #{forward.1} parent=1 // pred_check_branch
      %141 = sbr.rel (%p139) target = $region25
    $region24: #{forward.1} parent=1 // pred_region
      %142 = vst [vmem:[#allocation5] sm:$0xff] %v133
    $region25: #{forward.1} parent=1 // pred_fallthru
      _
    %p143 = scmp.gt.s32.totalorder 0, 0
    // Predicated region
    $region26: #{forward.1} parent=1 // pred_check
      %p144 = pneg %p143
    $region27: #{forward.1} parent=1 // pred_check_branch
      %146 = sbr.rel (%p144) target = $region29
    $region28: #{forward.1} parent=1 // pred_region
      %v147 = vld [vmem:[#allocation5] sm:$0xff]
      %v148 = vadd.f32 %v147, %v133
      %149 = vst [vmem:[#allocation5] sm:$0xff] %v148
    $region29: #{forward.1} parent=1 // pred_fallthru
      _
    // Predicated region
    $region30: #{forward.1} parent=1 // pred_check
      %p150 = pneg %p138
    $region31: #{forward.1} parent=1 // pred_check_branch
      %152 = sbr.rel (%p150) target = $region33
    $region32: #{forward.1} parent=1 // pred_region
      %v153 = vld [vmem:[#allocation5] sm:$0xff]
      %v154 = vld [vmem:[%s1] sm:$0xff]
      %156 = vset.pattern.permute.xlu0 0
      %157 = vperm.xlu0 %156, %v154
      %v158 = vpop.permute.xlu0 %157
      %v160 = vmul.f32 %v153, %v158
      %v161 = vld [vmem:[%s3] sm:$0x1]
      %v163 = vlaneseq
      %v164 = vshrl.u32 %v163, 7
      %v165 = vsub.s32 0, %v164
      %v166 = vrot.slane %v161, %v165
      %v168 = vmul.f32 %v160, %v166
      %169 = vst [vmem:[#allocation5] sm:$0xff] %v168
    $region33: #{forward.1} parent=1 // pred_fallthru
      _
    // Predicated region
    $region34: #{forward.1} parent=1 // pred_check
      _
    $region35: #{forward.1} parent=1 // pred_check_branch
      %171 = sbr.rel (0) target = $region37
    $region36: #{forward.1} parent=1 // pred_region
      %s173 = ssub.s32 128, 128
      %174 = vsyncadd [#allocation4], %s173
      %s176 = sshll.u32 [#allocation5], 4
      %s177 = int_to_ptr.vmem [resolvable:$true] %s176
      %179 = dma.vmem_to_hbm [thread:$0]  %s177, 128, %s4, [#allocation4]
    $region37: #{forward.1} parent=1 // pred_fallthru
      _
    // Predicated region
    $region38: #{forward.1} parent=1 // pred_check
      _
    $region39: #{forward.1} parent=1 // pred_check_branch
      %181 = sbr.rel (0) target = $region41
    $region40: #{forward.1} parent=1 // pred_region
      %182 = dma.done [#allocation4], 128
    $region41: #{forward.1} parent=1 // pred_fallthru
      _
    %183 = vsyncpa [#allocation3], 1
    %184 = vsyncpa [#allocation4], 1

</llo_original>
